<compile_context>
chip_gen: v7x
topology: tpu7x:2x2x1
jax: 0.10.0
libtpu: 0.0.40
codegen_flags: <defaults>
</compile_context>

<pallas_src>
import functools

import jax
import jax.numpy as jnp
from jax.experimental import pallas as pl
from jax.experimental.pallas import tpu as pltpu

H_SPATIAL, W_SPATIAL = 7, 29  # MiniHack observation spatial dims


def _round_up(x, m):
    return (x + m - 1) // m * m


def _cdiv(a, b):
    return (a + b - 1) // b


# ----------------------------- Pallas kernel ------------------------------ #

def _mlpae_kernel(x_ref,
                  w1_ref, b1_ref,
                  w2_ref, b2_ref,
                  w3_ref, b3_ref,
                  w4_ref, b4_ref,
                  out_ref):
    """Fused 4-layer MLP autoencoder forward on one (TILE_B, D) batch tile.

    x_ref  : (TILE_B, D)       flattened observation tile (any float dtype)
    wN_ref : (in, out)         pre-transposed weights in the compute dtype
    bN_ref : (1, out)          f32 biases
    out    : (TILE_B, D)       decoded logits tile
    """
    cdt = w1_ref.dtype                      # bf16 in production, f32 for tests
    x = x_ref[...].astype(cdt)              # per-tile VPU cast -> MXU operands

    # Encoder: Linear -> ReLU -> Linear -> ReLU (f32 accumulation on the MXU)
    h1 = jnp.dot(x, w1_ref[...], preferred_element_type=jnp.float32) + b1_ref[...]
    h1 = jnp.maximum(h1, 0.0)

    z = jnp.dot(h1.astype(cdt), w2_ref[...],
                preferred_element_type=jnp.float32) + b2_ref[...]
    z = jnp.maximum(z, 0.0)

    # Decoder: Linear -> ReLU -> Linear (logits, no final activation)
    h2 = jnp.dot(z.astype(cdt), w3_ref[...],
                 preferred_element_type=jnp.float32) + b3_ref[...]
    h2 = jnp.maximum(h2, 0.0)

    y = jnp.dot(h2.astype(cdt), w4_ref[...],
                preferred_element_type=jnp.float32) + b4_ref[...]
    out_ref[...] = y.astype(out_ref.dtype)


# ------------------------ one-time parameter prep -------------------------- #

def prepare_kernel_params(params, num_classes, *, compute_dtype=jnp.bfloat16):
    """Transpose PyTorch-layout (out,in) weights to (in,out), cast to the
    compute dtype (bf16 by default), and zero-pad only the latent dim 32->128.
    Run ONCE at setup; the per-call forward consumes the result unchanged."""
    D = num_classes * H_SPATIAL * W_SPATIAL
    (w1, b1), (w2, b2), (w3, b3), (w4, b4) = params
    hidden = w1.shape[0]          # 128 (already lane-aligned)
    latent = w2.shape[0]          # 32
    L_pad = _round_up(latent, 128)
    cdt = compute_dtype
    assert w1.shape[1] == D and w4.shape[0] == D

    w1_t = w1.T.astype(cdt)                                       # (D, hidden)
    b1_p = b1[None, :].astype(jnp.float32)

    # Padded latent lanes: zero W2 cols + zero b2 -> z padded lanes are 0.
    w2_t = jnp.zeros((hidden, L_pad), cdt).at[:, :latent].set(w2.T.astype(cdt))
    b2_p = jnp.zeros((1, L_pad), jnp.float32).at[:, :latent].set(
        b2[None, :].astype(jnp.float32))

    # Zero W3 rows for padded latent lanes -> no effect on h2.
    w3_t = jnp.zeros((L_pad, hidden), cdt).at[:latent, :].set(w3.T.astype(cdt))
    b3_p = b3[None, :].astype(jnp.float32)

    w4_t = w4.T.astype(cdt)                                       # (hidden, D)
    b4_p = b4[None, :].astype(jnp.float32)

    return (w1_t, b1_p, w2_t, b2_p, w3_t, b3_p, w4_t, b4_p)


# ------------------------------- wrapper ----------------------------------- #

def _choose_tile_b(B, max_tile=1024):
    """Adaptive batch tile: large (amortizes ~0.35us/step), multiple of 8,
    nearly balanced so ragged batches don't blow up the last tile, and >= 2
    grid steps for 512 <= B so v7x can shard tiles across its 2 TensorCores."""
    if B <= max_tile:
        if B >= 512:
            return _round_up(_cdiv(B, 2), 8)
        return B                          # single full-extent block (always legal)
    n_steps = _cdiv(B, max_tile)
    return _round_up(_cdiv(B, n_steps), 8)


@functools.partial(jax.jit, static_argnames=("num_classes", "tile_b", "out_dtype"))
def mlpae_forward(x_nchw, kernel_params, *, num_classes, tile_b=None,
                  out_dtype=jnp.float32):
    """MLPAE.forward.  x_nchw: (B, num_classes, 7, 29) in f32 or bf16.
    kernel_params: output of prepare_kernel_params (pre-transposed weights)."""
    B = x_nchw.shape[0]
    D = num_classes * H_SPATIAL * W_SPATIAL

    w1_t, b1_p, w2_t, b2_p, w3_t, b3_p, w4_t, b4_p = kernel_params
    hidden = w1_t.shape[1]
    L_pad = w2_t.shape[1]

    if tile_b is None:
        tile_b = _choose_tile_b(B)
    else:
        tile_b = max(8, _round_up(int(tile_b), 8))   # (8, .) sublane rule guard
        if tile_b >= B:
            tile_b = B                                # full-extent block
    grid = (_cdiv(B, tile_b),)                        # ragged last tile is masked

    x_flat = x_nchw.reshape(B, D)    # free view (row-major), == torch .view

    def _resident(arr):              # whole array VMEM-resident across all steps
        return pl.BlockSpec(arr.shape, lambda i: (0, 0))

    in_specs = [pl.BlockSpec((tile_b, D), lambda i: (i, 0))] + \
               [_resident(a) for a in kernel_params]
    out_spec = pl.BlockSpec((tile_b, D), lambda i: (i, 0))

    flops = 2 * B * (D * hidden + hidden * L_pad + L_pad * hidden + hidden * D)
    bytes_accessed = (
        x_flat.size * x_flat.dtype.itemsize
        + sum(a.size * a.dtype.itemsize for a in kernel_params)
        + B * D * jnp.dtype(out_dtype).itemsize)

    out = pl.pallas_call(
        _mlpae_kernel,
        out_shape=jax.ShapeDtypeStruct((B, D), out_dtype),
        grid=grid,
        in_specs=in_specs,
        out_specs=out_spec,
        compiler_params=pltpu.CompilerParams(
            dimension_semantics=("parallel",),        # shard tiles over v7x's 2 TCs
            vmem_limit_bytes=48 * 1024 * 1024,        # <= ~48 MiB per core (v7x)
        ),
        cost_estimate=pl.CostEstimate(
            flops=flops, transcendentals=0, bytes_accessed=bytes_accessed),
    )(x_flat, *kernel_params)

    # decoded.view(-1, num_classes, 7, 29)  -- free reshape, no slicing needed.
    return out.reshape(-1, num_classes, H_SPATIAL, W_SPATIAL)


# ------------------------- deterministic parameters ------------------------ #

def init_linear(key, in_features, out_features):
    """PyTorch nn.Linear default init."""
    kw, kb = jax.random.split(key)
    bound = 1.0 / jnp.sqrt(jnp.float32(in_features))
    w = jax.random.uniform(kw, (out_features, in_features), jnp.float32,
                           minval=-bound, maxval=bound)
    b = jax.random.uniform(kb, (out_features,), jnp.float32,
                           minval=-bound, maxval=bound)
    return w, b


def make_params(key, num_classes, hidden=128, latent=32):
    D = num_classes * H_SPATIAL * W_SPATIAL
    k1, k2, k3, k4 = jax.random.split(key, 4)
    enc1 = init_linear(k1, D, hidden)        # encoder Linear 1
    enc2 = init_linear(k2, hidden, latent)   # encoder Linear 2
    dec1 = init_linear(k3, latent, hidden)   # decoder Linear 1
    dec2 = init_linear(k4, hidden, D)        # decoder Linear 2
    return (enc1, enc2, dec1, dec2)


def reference_forward(x_nchw, params, num_classes):
    """Pure-JAX f32 reference for correctness checking."""
    B = x_nchw.shape[0]
    D = num_classes * H_SPATIAL * W_SPATIAL
    x = x_nchw.reshape(B, D)
    (w1, b1), (w2, b2), (w3, b3), (w4, b4) = params
    h1 = jnp.maximum(x @ w1.T + b1, 0.0)
    z = jnp.maximum(h1 @ w2.T + b2, 0.0)
    h2 = jnp.maximum(z @ w3.T + b3, 0.0)
    y = h2 @ w4.T + b4
    return y.reshape(-1, num_classes, H_SPATIAL, W_SPATIAL)


# --------------------------------- main ------------------------------------ #

if __name__ == "__main__":
    key = jax.random.PRNGKey(0)
    k_params, k_input = jax.random.split(key)

    num_classes = 4
    batch = 2

    params = make_params(k_params, num_classes, hidden=128, latent=32)

    # NCHW input, as PyTorch would feed it: (B, num_classes, 7, 29)
    x = jax.random.normal(k_input, (batch, num_classes, 7, 29), jnp.float32)
    ref = reference_forward(x, params, num_classes)

    # Production path: bf16 weights + bf16 MXU operands, f32 accumulation.
    kp_bf16 = prepare_kernel_params(params, num_classes)           # default bf16
    out_bf16 = mlpae_forward(x, kp_bf16, num_classes=num_classes)
    out_bf16 = jax.block_until_ready(out_bf16)
    assert out_bf16.shape == (batch, num_classes, 7, 29), out_bf16.shape
    assert jnp.allclose(out_bf16, ref, atol=5e-2, rtol=5e-2), (
        float(jnp.max(jnp.abs(out_bf16 - ref))))

    # Exactness path: f32 compute, tight tolerance.
    kp_f32 = prepare_kernel_params(params, num_classes,
                                   compute_dtype=jnp.float32)
    out_f32 = mlpae_forward(x, kp_f32, num_classes=num_classes)
    out_f32 = jax.block_until_ready(out_f32)
    assert jnp.allclose(out_f32, ref, atol=1e-4, rtol=1e-4), (
        float(jnp.max(jnp.abs(out_f32 - ref))))

    print("KERNEL_OK")
</pallas_src>

<mosaic_0001>
module attributes {stable_mosaic.version = 11 : i64} {
  func.func @_mlpae_kernel(%arg0: i32, %arg1: memref<2x812xf32, #tpu.memory_space<vmem>>, %arg2: memref<812x128xbf16, #tpu.memory_space<vmem>>, %arg3: memref<1x128xf32, #tpu.memory_space<vmem>>, %arg4: memref<128x128xbf16, #tpu.memory_space<vmem>>, %arg5: memref<1x128xf32, #tpu.memory_space<vmem>>, %arg6: memref<128x128xbf16, #tpu.memory_space<vmem>>, %arg7: memref<1x128xf32, #tpu.memory_space<vmem>>, %arg8: memref<128x812xbf16, #tpu.memory_space<vmem>>, %arg9: memref<1x812xf32, #tpu.memory_space<vmem>>, %arg10: memref<2x812xf32, #tpu.memory_space<vmem>>) attributes {dimension_semantics = [#tpu.dimension_semantics<parallel>], iteration_bounds = array<i64: 1>, scalar_prefetch = 0 : i64, scratch_operands = 0 : i64, tpu.core_type = #tpu.core_type<tc>, window_params = [{transform_indices = @transform_0, window_bounds = array<i64: 2, 812>}, {pipeline_mode = #tpu.pipeline_mode<synchronous>, transform_indices = @transform_1, window_bounds = array<i64: 812, 128>}, {pipeline_mode = #tpu.pipeline_mode<synchronous>, transform_indices = @transform_2, window_bounds = array<i64: 1, 128>}, {pipeline_mode = #tpu.pipeline_mode<synchronous>, transform_indices = @transform_3, window_bounds = array<i64: 128, 128>}, {pipeline_mode = #tpu.pipeline_mode<synchronous>, transform_indices = @transform_4, window_bounds = array<i64: 1, 128>}, {pipeline_mode = #tpu.pipeline_mode<synchronous>, transform_indices = @transform_5, window_bounds = array<i64: 128, 128>}, {pipeline_mode = #tpu.pipeline_mode<synchronous>, transform_indices = @transform_6, window_bounds = array<i64: 1, 128>}, {pipeline_mode = #tpu.pipeline_mode<synchronous>, transform_indices = @transform_7, window_bounds = array<i64: 128, 812>}, {pipeline_mode = #tpu.pipeline_mode<synchronous>, transform_indices = @transform_8, window_bounds = array<i64: 1, 812>}, {transform_indices = @transform_9, window_bounds = array<i64: 2, 812>}]} {
    %c0 = arith.constant 0 : index
    %c0_0 = arith.constant 0 : index
    %0 = vector.load %arg1[%c0, %c0_0] : memref<2x812xf32, #tpu.memory_space<vmem>>, vector<2x812xf32>
    %1 = arith.truncf %0 : vector<2x812xf32> to vector<2x812xbf16>
    %c0_1 = arith.constant 0 : index
    %c0_2 = arith.constant 0 : index
    %2 = vector.load %arg2[%c0_1, %c0_2] : memref<812x128xbf16, #tpu.memory_space<vmem>>, vector<812x128xbf16>
    %cst = arith.constant dense<0.000000e+00> : vector<2x128xf32>
    %3 = tpu.matmul %1, %2, %cst {dimension_numbers = #tpu.dot_dimension_numbers<[1], [0], [0], [1], [0, 0, 1, 1], [], []>} : vector<2x812xbf16>, vector<812x128xbf16>, vector<2x128xf32> -> vector<2x128xf32>
    %c0_3 = arith.constant 0 : index
    %c0_4 = arith.constant 0 : index
    %4 = vector.load %arg3[%c0_3, %c0_4] : memref<1x128xf32, #tpu.memory_space<vmem>>, vector<1x128xf32>
    %5 = vector.broadcast %4 : vector<1x128xf32> to vector<2x128xf32>
    %6 = arith.addf %3, %5 : vector<2x128xf32>
    %cst_5 = arith.constant 0.000000e+00 : f32
    %7 = vector.broadcast %cst_5 : f32 to vector<2x128xf32>
    %8 = arith.maximumf %6, %7 : vector<2x128xf32>
    %9 = arith.truncf %8 : vector<2x128xf32> to vector<2x128xbf16>
    %c0_6 = arith.constant 0 : index
    %c0_7 = arith.constant 0 : index
    %10 = vector.load %arg4[%c0_6, %c0_7] : memref<128x128xbf16, #tpu.memory_space<vmem>>, vector<128x128xbf16>
    %cst_8 = arith.constant dense<0.000000e+00> : vector<2x128xf32>
    %11 = tpu.matmul %9, %10, %cst_8 {dimension_numbers = #tpu.dot_dimension_numbers<[1], [0], [0], [1], [0, 0, 1, 1], [], []>} : vector<2x128xbf16>, vector<128x128xbf16>, vector<2x128xf32> -> vector<2x128xf32>
    %c0_9 = arith.constant 0 : index
    %c0_10 = arith.constant 0 : index
    %12 = vector.load %arg5[%c0_9, %c0_10] : memref<1x128xf32, #tpu.memory_space<vmem>>, vector<1x128xf32>
    %13 = vector.broadcast %12 : vector<1x128xf32> to vector<2x128xf32>
    %14 = arith.addf %11, %13 : vector<2x128xf32>
    %cst_11 = arith.constant 0.000000e+00 : f32
    %15 = vector.broadcast %cst_11 : f32 to vector<2x128xf32>
    %16 = arith.maximumf %14, %15 : vector<2x128xf32>
    %17 = arith.truncf %16 : vector<2x128xf32> to vector<2x128xbf16>
    %c0_12 = arith.constant 0 : index
    %c0_13 = arith.constant 0 : index
    %18 = vector.load %arg6[%c0_12, %c0_13] : memref<128x128xbf16, #tpu.memory_space<vmem>>, vector<128x128xbf16>
    %cst_14 = arith.constant dense<0.000000e+00> : vector<2x128xf32>
    %19 = tpu.matmul %17, %18, %cst_14 {dimension_numbers = #tpu.dot_dimension_numbers<[1], [0], [0], [1], [0, 0, 1, 1], [], []>} : vector<2x128xbf16>, vector<128x128xbf16>, vector<2x128xf32> -> vector<2x128xf32>
    %c0_15 = arith.constant 0 : index
    %c0_16 = arith.constant 0 : index
    %20 = vector.load %arg7[%c0_15, %c0_16] : memref<1x128xf32, #tpu.memory_space<vmem>>, vector<1x128xf32>
    %21 = vector.broadcast %20 : vector<1x128xf32> to vector<2x128xf32>
    %22 = arith.addf %19, %21 : vector<2x128xf32>
    %cst_17 = arith.constant 0.000000e+00 : f32
    %23 = vector.broadcast %cst_17 : f32 to vector<2x128xf32>
    %24 = arith.maximumf %22, %23 : vector<2x128xf32>
    %25 = arith.truncf %24 : vector<2x128xf32> to vector<2x128xbf16>
    %c0_18 = arith.constant 0 : index
    %c0_19 = arith.constant 0 : index
    %26 = vector.load %arg8[%c0_18, %c0_19] : memref<128x812xbf16, #tpu.memory_space<vmem>>, vector<128x812xbf16>
    %cst_20 = arith.constant dense<0.000000e+00> : vector<2x812xf32>
    %27 = tpu.matmul %25, %26, %cst_20 {dimension_numbers = #tpu.dot_dimension_numbers<[1], [0], [0], [1], [0, 0, 1, 1], [], []>} : vector<2x128xbf16>, vector<128x812xbf16>, vector<2x812xf32> -> vector<2x812xf32>
    %c0_21 = arith.constant 0 : index
    %c0_22 = arith.constant 0 : index
    %28 = vector.load %arg9[%c0_21, %c0_22] : memref<1x812xf32, #tpu.memory_space<vmem>>, vector<1x812xf32>
    %29 = vector.broadcast %28 : vector<1x812xf32> to vector<2x812xf32>
    %30 = arith.addf %27, %29 : vector<2x812xf32>
    %c0_23 = arith.constant 0 : index
    %c0_24 = arith.constant 0 : index
    %31 = vector.load %arg10[%c0_23, %c0_24] : memref<2x812xf32, #tpu.memory_space<vmem>>, vector<2x812xf32>
    tpu.vector_store %arg10[%c0_23, %c0_24], %30 {strides = array<i32>} : memref<2x812xf32, #tpu.memory_space<vmem>>, vector<2x812xf32>,
    return
  }
  func.func @transform_0(%arg0: i32) -> (i32, i32) {
    %c0_i32 = arith.constant 0 : i32
    %c0_i32_0 = arith.constant 0 : i32
    return %arg0, %c0_i32 : i32, i32
  }
  func.func @transform_1(%arg0: i32) -> (i32, i32) {
    %c0_i32 = arith.constant 0 : i32
    %c0_i32_0 = arith.constant 0 : i32
    %c0_i32_1 = arith.constant 0 : i32
    return %c0_i32, %c0_i32_0 : i32, i32
  }
  func.func @transform_2(%arg0: i32) -> (i32, i32) {
    %c0_i32 = arith.constant 0 : i32
    %c0_i32_0 = arith.constant 0 : i32
    %c0_i32_1 = arith.constant 0 : i32
    return %c0_i32, %c0_i32_0 : i32, i32
  }
  func.func @transform_3(%arg0: i32) -> (i32, i32) {
    %c0_i32 = arith.constant 0 : i32
    %c0_i32_0 = arith.constant 0 : i32
    %c0_i32_1 = arith.constant 0 : i32
    return %c0_i32, %c0_i32_0 : i32, i32
  }
  func.func @transform_4(%arg0: i32) -> (i32, i32) {
    %c0_i32 = arith.constant 0 : i32
    %c0_i32_0 = arith.constant 0 : i32
    %c0_i32_1 = arith.constant 0 : i32
    return %c0_i32, %c0_i32_0 : i32, i32
  }
  func.func @transform_5(%arg0: i32) -> (i32, i32) {
    %c0_i32 = arith.constant 0 : i32
    %c0_i32_0 = arith.constant 0 : i32
    %c0_i32_1 = arith.constant 0 : i32
    return %c0_i32, %c0_i32_0 : i32, i32
  }
  func.func @transform_6(%arg0: i32) -> (i32, i32) {
    %c0_i32 = arith.constant 0 : i32
    %c0_i32_0 = arith.constant 0 : i32
    %c0_i32_1 = arith.constant 0 : i32
    return %c0_i32, %c0_i32_0 : i32, i32
  }
  func.func @transform_7(%arg0: i32) -> (i32, i32) {
    %c0_i32 = arith.constant 0 : i32
    %c0_i32_0 = arith.constant 0 : i32
    %c0_i32_1 = arith.constant 0 : i32
    return %c0_i32, %c0_i32_0 : i32, i32
  }
  func.func @transform_8(%arg0: i32) -> (i32, i32) {
    %c0_i32 = arith.constant 0 : i32
    %c0_i32_0 = arith.constant 0 : i32
    %c0_i32_1 = arith.constant 0 : i32
    return %c0_i32, %c0_i32_0 : i32, i32
  }
  func.func @transform_9(%arg0: i32) -> (i32, i32) {
    %c0_i32 = arith.constant 0 : i32
    %c0_i32_0 = arith.constant 0 : i32
    return %arg0, %c0_i32 : i32, i32
  }
}

</mosaic_0001>

<llo_original>
// kernel: mlpae_forward.1
$region0: #{mlpae_forward.1}
  #allocation0 [shape = 'u32[]', space=smem, size = 0x4, offset = 0x4, fixed_abs, tag = 'smem constant byte address 0x4 - core index']
  #allocation1 [shape = 'u32[144,128]{1,0:T(1,128)}', space=vmem, size = 0x12000, scoped, tag = 'internal scratch']
  %s0 = inlined_call_operand.vmem [shape: f32[2,812], index: 0, kind: input, shape index: {}]
  %s1 = inlined_call_operand.vmem [shape: bf16[812,128], index: 1, kind: input, shape index: {}]
  %s2 = inlined_call_operand.vmem [shape: f32[1,128], index: 2, kind: input, shape index: {}]
  %s3 = inlined_call_operand.vmem [shape: bf16[128,128], index: 3, kind: input, shape index: {}]
  %s4 = inlined_call_operand.vmem [shape: f32[1,128], index: 4, kind: input, shape index: {}]
  %s5 = inlined_call_operand.vmem [shape: bf16[128,128], index: 5, kind: input, shape index: {}]
  %s6 = inlined_call_operand.vmem [shape: f32[1,128], index: 6, kind: input, shape index: {}]
  %s7 = inlined_call_operand.vmem [shape: bf16[128,812], index: 7, kind: input, shape index: {}]
  %s8 = inlined_call_operand.vmem [shape: f32[1,812], index: 8, kind: input, shape index: {}]
  %s9 = inlined_call_operand.vmem [shape: f32[2,812], index: 9, kind: output, shape index: {}]
  %s10 = sld [smem:[#allocation0]]
  $region46: #{mlpae_forward.1} parent=0
    _
  %s12 = ssub.s32 1, %s10
  %s13 = scalar_select 0, %s12, %s10
  // Predicated region
  $region2: #{mlpae_forward.1} parent=0 // pred_check
    _
  $region3: #{mlpae_forward.1} parent=0 // pred_check_branch
    %15 = sbr.rel (0) target = $region5
  $region4: #{mlpae_forward.1} parent=0 // pred_region
    _
  $region5: #{mlpae_forward.1} parent=0 // pred_fallthru
    _
  // Predicated region
  $region6: #{mlpae_forward.1} parent=0 // pred_check
    _
  $region7: #{mlpae_forward.1} parent=0 // pred_check_branch
    %17 = sbr.rel (0) target = $region9
  $region8: #{mlpae_forward.1} parent=0 // pred_region
    _
  $region9: #{mlpae_forward.1} parent=0 // pred_fallthru
    _
  // Predicated region
  $region10: #{mlpae_forward.1} parent=0 // pred_check
    _
  $region11: #{mlpae_forward.1} parent=0 // pred_check_branch
    %19 = sbr.rel (0) target = $region13
  $region12: #{mlpae_forward.1} parent=0 // pred_region
    _
  $region13: #{mlpae_forward.1} parent=0 // pred_fallthru
    _
  // Predicated region
  $region14: #{mlpae_forward.1} parent=0 // pred_check
    _
  $region15: #{mlpae_forward.1} parent=0 // pred_check_branch
    %21 = sbr.rel (0) target = $region17
  $region16: #{mlpae_forward.1} parent=0 // pred_region
    _
  $region17: #{mlpae_forward.1} parent=0 // pred_fallthru
    _
  // Predicated region
  $region18: #{mlpae_forward.1} parent=0 // pred_check
    _
  $region19: #{mlpae_forward.1} parent=0 // pred_check_branch
    %23 = sbr.rel (0) target = $region21
  $region20: #{mlpae_forward.1} parent=0 // pred_region
    _
  $region21: #{mlpae_forward.1} parent=0 // pred_fallthru
    _
  // Predicated region
  $region22: #{mlpae_forward.1} parent=0 // pred_check
    _
  $region23: #{mlpae_forward.1} parent=0 // pred_check_branch
    %25 = sbr.rel (0) target = $region25
  $region24: #{mlpae_forward.1} parent=0 // pred_region
    _
  $region25: #{mlpae_forward.1} parent=0 // pred_fallthru
    _
  // Predicated region
  $region26: #{mlpae_forward.1} parent=0 // pred_check
    _
  $region27: #{mlpae_forward.1} parent=0 // pred_check_branch
    %27 = sbr.rel (0) target = $region29
  $region28: #{mlpae_forward.1} parent=0 // pred_region
    _
  $region29: #{mlpae_forward.1} parent=0 // pred_fallthru
    _
  // Predicated region
  $region30: #{mlpae_forward.1} parent=0 // pred_check
    _
  $region31: #{mlpae_forward.1} parent=0 // pred_check_branch
    %29 = sbr.rel (0) target = $region33
  $region32: #{mlpae_forward.1} parent=0 // pred_region
    _
  $region33: #{mlpae_forward.1} parent=0 // pred_fallthru
    _
  // Predicated region
  $region34: #{mlpae_forward.1} parent=0 // pred_check
    _
  $region35: #{mlpae_forward.1} parent=0 // pred_check_branch
    %31 = sbr.rel (0) target = $region37
  $region36: #{mlpae_forward.1} parent=0 // pred_region
    _
  $region37: #{mlpae_forward.1} parent=0 // pred_fallthru
    _
  %v33 = vld [vmem:[%s0] sm:$0xff]
  %v34 = vld [vmem:[%s0 + $0x8] sm:$0x3f]
  %v37 = vcombine.high %v33, %v33
  %v39 = vunpack.c.l.s4 1983009808
  %v40 = vunpack.c.0.s8 %v39
  %v41 = vlaneseq
  %v42 = vshrl.u32 %v41, 7
  %v43 = vsub.s32 %v40, %v42
  %v44 = vrot.slane %v33, %v43
  %v46 = vunpack.c.l.s4 1983009808
  %v47 = vunpack.c.0.s8 %v46
  %v48 = vlaneseq
  %v49 = vshrl.u32 %v48, 7
  %v50 = vsub.s32 %v47, %v49
  %v51 = vrot.slane %v37, %v50
  %v52 = vcombine.high %v44, %v44
  %v53 = vcombine.high %v51, %v51
  %v54 = vcombine.high %v34, %v34
  %v56 = vunpack.c.l.s4 1983009808
  %v57 = vunpack.c.0.s8 %v56
  %v58 = vlaneseq
  %v59 = vshrl.u32 %v58, 7
  %v60 = vsub.s32 %v57, %v59
  %v61 = vrot.slane %v34, %v60
  %v63 = vunpack.c.l.s4 1983009808
  %v64 = vunpack.c.0.s8 %v63
  %v65 = vlaneseq
  %v66 = vshrl.u32 %v65, 7
  %v67 = vsub.s32 %v64, %v66
  %v68 = vrot.slane %v54, %v67
  %v69 = vcombine.high %v61, %v61
  %v77 = vpack.c.bf16 %v44, %v44
  %v78 = vpack.c.bf16 %v52, %v52
  %v79 = vpack.c.bf16 %v51, %v51
  %v80 = vpack.c.bf16 %v53, %v53
  %v81 = vpack.c.bf16 %v61, %v61
  %v82 = vpack.c.bf16 %v69, %v69
  %v83 = vpack.c.bf16 %v68, %v68
  %v84 = vld [vmem:[%s1] sm:$0xf]
  %v85 = vld [vmem:[%s1 + $0x4] sm:$0xf]
  %v86 = vld [vmem:[%s1 + $0x8] sm:$0xf]
  %v87 = vld [vmem:[%s1 + $0xc] sm:$0xf]
  %v88 = vld [vmem:[%s1 + $0x10] sm:$0xf]
  %v89 = vld [vmem:[%s1 + $0x14] sm:$0xf]
  %v90 = vld [vmem:[%s1 + $0x18] sm:$0xf]
  %v91 = vld [vmem:[%s1 + $0x1c] sm:$0xf]
  %v92 = vld [vmem:[%s1 + $0x20] sm:$0xf]
  %v93 = vld [vmem:[%s1 + $0x24] sm:$0xf]
  %v94 = vld [vmem:[%s1 + $0x28] sm:$0xf]
  %v95 = vld [vmem:[%s1 + $0x2c] sm:$0xf]
  %v96 = vld [vmem:[%s1 + $0x30] sm:$0xf]
  %v97 = vld [vmem:[%s1 + $0x34] sm:$0xf]
  %v98 = vld [vmem:[%s1 + $0x38] sm:$0xf]
  %v99 = vld [vmem:[%s1 + $0x3c] sm:$0xf]
  %v100 = vld [vmem:[%s1 + $0x40] sm:$0xf]
  %v101 = vld [vmem:[%s1 + $0x44] sm:$0xf]
  %v102 = vld [vmem:[%s1 + $0x48] sm:$0xf]
  %v103 = vld [vmem:[%s1 + $0x4c] sm:$0xf]
  %v104 = vld [vmem:[%s1 + $0x50] sm:$0xf]
  %v105 = vld [vmem:[%s1 + $0x54] sm:$0xf]
  %v106 = vld [vmem:[%s1 + $0x58] sm:$0xf]
  %v107 = vld [vmem:[%s1 + $0x5c] sm:$0xf]
  %v108 = vld [vmem:[%s1 + $0x60] sm:$0xf]
  %v109 = vld [vmem:[%s1 + $0x64] sm:$0xf]
  %v110 = vld [vmem:[%s1 + $0x68] sm:$0xf]
  %v111 = vld [vmem:[%s1 + $0x6c] sm:$0xf]
  %v112 = vld [vmem:[%s1 + $0x70] sm:$0xf]
  %v113 = vld [vmem:[%s1 + $0x74] sm:$0xf]
  %v114 = vld [vmem:[%s1 + $0x78] sm:$0xf]
  %v115 = vld [vmem:[%s1 + $0x7c] sm:$0xf]
  %v116 = vld [vmem:[%s1 + $0x80] sm:$0xf]
  %v117 = vld [vmem:[%s1 + $0x84] sm:$0xf]
  %v118 = vld [vmem:[%s1 + $0x88] sm:$0xf]
  %v119 = vld [vmem:[%s1 + $0x8c] sm:$0xf]
  %v120 = vld [vmem:[%s1 + $0x90] sm:$0xf]
  %v121 = vld [vmem:[%s1 + $0x94] sm:$0xf]
  %v122 = vld [vmem:[%s1 + $0x98] sm:$0xf]
  %v123 = vld [vmem:[%s1 + $0x9c] sm:$0xf]
  %v124 = vld [vmem:[%s1 + $0xa0] sm:$0xf]
  %v125 = vld [vmem:[%s1 + $0xa4] sm:$0xf]
  %v126 = vld [vmem:[%s1 + $0xa8] sm:$0xf]
  %v127 = vld [vmem:[%s1 + $0xac] sm:$0xf]
  %v128 = vld [vmem:[%s1 + $0xb0] sm:$0xf]
  %v129 = vld [vmem:[%s1 + $0xb4] sm:$0xf]
  %v130 = vld [vmem:[%s1 + $0xb8] sm:$0xf]
  %v131 = vld [vmem:[%s1 + $0xbc] sm:$0xf]
  %v132 = vld [vmem:[%s1 + $0xc0] sm:$0xf]
  %v133 = vld [vmem:[%s1 + $0xc4] sm:$0xf]
  %v134 = vld [vmem:[%s1 + $0xc8] sm:$0xf]
  %v135 = vld [vmem:[%s1 + $0xcc] sm:$0xf]
  %v136 = vld [vmem:[%s1 + $0xd0] sm:$0xf]
  %v137 = vld [vmem:[%s1 + $0xd4] sm:$0xf]
  %v138 = vld [vmem:[%s1 + $0xd8] sm:$0xf]
  %v139 = vld [vmem:[%s1 + $0xdc] sm:$0xf]
  %v140 = vld [vmem:[%s1 + $0xe0] sm:$0xf]
  %v141 = vld [vmem:[%s1 + $0xe4] sm:$0xf]
  %v142 = vld [vmem:[%s1 + $0xe8] sm:$0xf]
  %v143 = vld [vmem:[%s1 + $0xec] sm:$0xf]
  %v144 = vld [vmem:[%s1 + $0xf0] sm:$0xf]
  %v145 = vld [vmem:[%s1 + $0xf4] sm:$0xf]
  %v146 = vld [vmem:[%s1 + $0xf8] sm:$0xf]
  %v147 = vld [vmem:[%s1 + $0xfc] sm:$0xf]
  %v148 = vld [vmem:[%s1 + $0x100] sm:$0xf]
  %v149 = vld [vmem:[%s1 + $0x104] sm:$0xf]
  %v150 = vld [vmem:[%s1 + $0x108] sm:$0xf]
  %v151 = vld [vmem:[%s1 + $0x10c] sm:$0xf]
  %v152 = vld [vmem:[%s1 + $0x110] sm:$0xf]
  %v153 = vld [vmem:[%s1 + $0x114] sm:$0xf]
  %v154 = vld [vmem:[%s1 + $0x118] sm:$0xf]
  %v155 = vld [vmem:[%s1 + $0x11c] sm:$0xf]
  %v156 = vld [vmem:[%s1 + $0x120] sm:$0xf]
  %v157 = vld [vmem:[%s1 + $0x124] sm:$0xf]
  %v158 = vld [vmem:[%s1 + $0x128] sm:$0xf]
  %v159 = vld [vmem:[%s1 + $0x12c] sm:$0xf]
  %v160 = vld [vmem:[%s1 + $0x130] sm:$0xf]
  %v161 = vld [vmem:[%s1 + $0x134] sm:$0xf]
  %v162 = vld [vmem:[%s1 + $0x138] sm:$0xf]
  %v163 = vld [vmem:[%s1 + $0x13c] sm:$0xf]
  %v164 = vld [vmem:[%s1 + $0x140] sm:$0xf]
  %v165 = vld [vmem:[%s1 + $0x144] sm:$0xf]
  %v166 = vld [vmem:[%s1 + $0x148] sm:$0xf]
  %v167 = vld [vmem:[%s1 + $0x14c] sm:$0xf]
  %v168 = vld [vmem:[%s1 + $0x150] sm:$0xf]
  %v169 = vld [vmem:[%s1 + $0x154] sm:$0xf]
  %v170 = vld [vmem:[%s1 + $0x158] sm:$0xf]
  %v171 = vld [vmem:[%s1 + $0x15c] sm:$0xf]
  %v172 = vld [vmem:[%s1 + $0x160] sm:$0xf]
  %v173 = vld [vmem:[%s1 + $0x164] sm:$0xf]
  %v174 = vld [vmem:[%s1 + $0x168] sm:$0xf]
  %v175 = vld [vmem:[%s1 + $0x16c] sm:$0xf]
  %v176 = vld [vmem:[%s1 + $0x170] sm:$0xf]
  %v177 = vld [vmem:[%s1 + $0x174] sm:$0xf]
  %v178 = vld [vmem:[%s1 + $0x178] sm:$0xf]
  %v179 = vld [vmem:[%s1 + $0x17c] sm:$0xf]
  %v180 = vld [vmem:[%s1 + $0x180] sm:$0xf]
  %v181 = vld [vmem:[%s1 + $0x184] sm:$0xf]
  %v182 = vld [vmem:[%s1 + $0x188] sm:$0xf]
  %v183 = vld [vmem:[%s1 + $0x18c] sm:$0xf]
  %v184 = vld [vmem:[%s1 + $0x190] sm:$0xf]
  %v185 = vld [vmem:[%s1 + $0x194] sm:$0x3]
  %v186 = vld [vmem:[%s2] sm:$0x1]
  %v188 = vlaneseq
  %v189 = vshrl.u32 %v188, 7
  %v190 = vsub.s32 0, %v189
  %v191 = vrot.slane %v186, %v190
  %v295 = vunpack.c.l.b16 %v84
  %v296 = vunpack.c.l.b16 %v85
  %v297 = vunpack.c.l.b16 %v86
  %v298 = vunpack.c.l.b16 %v87
  %v299 = vunpack.c.l.b16 %v88
  %v300 = vunpack.c.l.b16 %v89
  %v301 = vunpack.c.l.b16 %v90
  %v302 = vunpack.c.l.b16 %v91
  %v303 = vunpack.c.l.b16 %v92
  %v304 = vunpack.c.l.b16 %v93
  %v305 = vunpack.c.l.b16 %v94
  %v306 = vunpack.c.l.b16 %v95
  %v307 = vunpack.c.l.b16 %v96
  %v308 = vunpack.c.l.b16 %v97
  %v309 = vunpack.c.l.b16 %v98
  %v310 = vunpack.c.l.b16 %v99
  %v311 = vunpack.c.l.b16 %v100
  %v312 = vunpack.c.l.b16 %v101
  %v313 = vunpack.c.l.b16 %v102
  %v314 = vunpack.c.l.b16 %v103
  %v315 = vunpack.c.l.b16 %v104
  %v316 = vunpack.c.l.b16 %v105
  %v317 = vunpack.c.l.b16 %v106
  %v318 = vunpack.c.l.b16 %v107
  %v319 = vunpack.c.l.b16 %v108
  %v320 = vunpack.c.l.b16 %v109
  %v321 = vunpack.c.l.b16 %v110
  %v322 = vunpack.c.l.b16 %v111
  %v323 = vunpack.c.l.b16 %v112
  %v324 = vunpack.c.l.b16 %v113
  %v325 = vunpack.c.l.b16 %v114
  %v326 = vunpack.c.l.b16 %v115
  %v327 = vunpack.c.l.b16 %v116
  %v328 = vunpack.c.l.b16 %v117
  %v329 = vunpack.c.l.b16 %v118
  %v330 = vunpack.c.l.b16 %v119
  %v331 = vunpack.c.l.b16 %v120
  %v332 = vunpack.c.l.b16 %v121
  %v333 = vunpack.c.l.b16 %v122
  %v334 = vunpack.c.l.b16 %v123
  %v335 = vunpack.c.l.b16 %v124
  %v336 = vunpack.c.l.b16 %v125
  %v337 = vunpack.c.l.b16 %v126
  %v338 = vunpack.c.l.b16 %v127
  %v339 = vunpack.c.l.b16 %v128
  %v340 = vunpack.c.l.b16 %v129
  %v341 = vunpack.c.l.b16 %v130
  %v342 = vunpack.c.l.b16 %v131
  %v343 = vunpack.c.l.b16 %v132
  %v344 = vunpack.c.l.b16 %v133
  %v345 = vunpack.c.l.b16 %v134
  %v346 = vunpack.c.l.b16 %v135
  %v347 = vunpack.c.l.b16 %v136
  %v348 = vunpack.c.l.b16 %v137
  %v349 = vunpack.c.l.b16 %v138
  %v350 = vunpack.c.l.b16 %v139
  %v351 = vunpack.c.l.b16 %v140
  %v352 = vunpack.c.l.b16 %v141
  %v353 = vunpack.c.l.b16 %v142
  %v354 = vunpack.c.l.b16 %v143
  %v355 = vunpack.c.l.b16 %v144
  %v356 = vunpack.c.l.b16 %v145
  %v357 = vunpack.c.l.b16 %v146
  %v358 = vunpack.c.l.b16 %v147
  %v359 = vunpack.c.l.b16 %v148
  %v360 = vunpack.c.l.b16 %v149
  %v361 = vunpack.c.l.b16 %v150
  %v362 = vunpack.c.l.b16 %v151
  %v363 = vunpack.c.l.b16 %v152
  %v364 = vunpack.c.l.b16 %v153
  %v365 = vunpack.c.l.b16 %v154
  %v366 = vunpack.c.l.b16 %v155
  %v367 = vunpack.c.l.b16 %v156
  %v368 = vunpack.c.l.b16 %v157
  %v369 = vunpack.c.l.b16 %v158
  %v370 = vunpack.c.l.b16 %v159
  %v371 = vunpack.c.l.b16 %v160
  %v372 = vunpack.c.l.b16 %v161
  %v373 = vunpack.c.l.b16 %v162
  %v374 = vunpack.c.l.b16 %v163
  %v375 = vunpack.c.l.b16 %v164
  %v376 = vunpack.c.l.b16 %v165
  %v377 = vunpack.c.l.b16 %v166
  %v378 = vunpack.c.l.b16 %v167
  %v379 = vunpack.c.l.b16 %v168
  %v380 = vunpack.c.l.b16 %v169
  %v381 = vunpack.c.l.b16 %v170
  %v382 = vunpack.c.l.b16 %v171
  %v383 = vunpack.c.l.b16 %v172
  %v384 = vunpack.c.l.b16 %v173
  %v385 = vunpack.c.l.b16 %v174
  %v386 = vunpack.c.l.b16 %v175
  %v387 = vunpack.c.l.b16 %v176
  %v388 = vunpack.c.l.b16 %v177
  %v389 = vunpack.c.l.b16 %v178
  %v390 = vunpack.c.l.b16 %v179
  %v391 = vunpack.c.l.b16 %v180
  %v392 = vunpack.c.l.b16 %v181
  %v393 = vunpack.c.l.b16 %v182
  %v394 = vunpack.c.l.b16 %v183
  %v395 = vunpack.c.l.b16 %v184
  %v396 = vunpack.c.l.b16 %v185
  %v397 = vpack.c.b16 %v296, %v295
  %v398 = vpack.c.b16 %v298, %v297
  %v399 = vpack.c.b16 %v300, %v299
  %v400 = vpack.c.b16 %v302, %v301
  %v401 = vpack.c.b16 %v304, %v303
  %v402 = vpack.c.b16 %v306, %v305
  %v403 = vpack.c.b16 %v308, %v307
  %v404 = vpack.c.b16 %v310, %v309
  %v405 = vpack.c.b16 %v312, %v311
  %v406 = vpack.c.b16 %v314, %v313
  %v407 = vpack.c.b16 %v316, %v315
  %v408 = vpack.c.b16 %v318, %v317
  %v409 = vpack.c.b16 %v320, %v319
  %v410 = vpack.c.b16 %v322, %v321
  %v411 = vpack.c.b16 %v324, %v323
  %v412 = vpack.c.b16 %v326, %v325
  %v413 = vpack.c.b16 %v328, %v327
  %v414 = vpack.c.b16 %v330, %v329
  %v415 = vpack.c.b16 %v332, %v331
  %v416 = vpack.c.b16 %v334, %v333
  %v417 = vpack.c.b16 %v336, %v335
  %v418 = vpack.c.b16 %v338, %v337
  %v419 = vpack.c.b16 %v340, %v339
  %v420 = vpack.c.b16 %v342, %v341
  %v421 = vpack.c.b16 %v344, %v343
  %v422 = vpack.c.b16 %v346, %v345
  %v423 = vpack.c.b16 %v348, %v347
  %v424 = vpack.c.b16 %v350, %v349
  %v425 = vpack.c.b16 %v352, %v351
  %v426 = vpack.c.b16 %v354, %v353
  %v427 = vpack.c.b16 %v356, %v355
  %v428 = vpack.c.b16 %v358, %v357
  %v429 = vpack.c.b16 %v360, %v359
  %v430 = vpack.c.b16 %v362, %v361
  %v431 = vpack.c.b16 %v364, %v363
  %v432 = vpack.c.b16 %v366, %v365
  %v433 = vpack.c.b16 %v368, %v367
  %v434 = vpack.c.b16 %v370, %v369
  %v435 = vpack.c.b16 %v372, %v371
  %v436 = vpack.c.b16 %v374, %v373
  %v437 = vpack.c.b16 %v376, %v375
  %v438 = vpack.c.b16 %v378, %v377
  %v439 = vpack.c.b16 %v380, %v379
  %v440 = vpack.c.b16 %v382, %v381
  %v441 = vpack.c.b16 %v384, %v383
  %v442 = vpack.c.b16 %v386, %v385
  %v443 = vpack.c.b16 %v388, %v387
  %v444 = vpack.c.b16 %v390, %v389
  %v445 = vpack.c.b16 %v392, %v391
  %v446 = vpack.c.b16 %v394, %v393
  %v447 = vpack.c.b16 %v396, %v395
  %vm498 = vcmask 359424
  %v500 = vsel %vm498, %v83, 0
  %vm502 = vcmask 1045504
  %v504 = vsel %vm502, %v447, 0
  %506 = vmatprep.subr.bf16.mxu0 0
  %507 = vmatpush1.bf16.msra.mxu0 %v397
  %508 = vmatprep.subr.bf16.mxu0 0
  %509 = vmatpush1.bf16.msra.mxu0 %v398
  %510 = vmatprep.subr.bf16.mxu0 0
  %511 = vmatpush1.bf16.msra.mxu0 %v399
  %512 = vmatprep.subr.bf16.mxu0 0
  %513 = vmatpush1.bf16.msra.mxu0 %v400
  %514 = vmatprep.subr.bf16.mxu0 0
  %515 = vmatpush1.bf16.msra.mxu0 %v401
  %516 = vmatprep.subr.bf16.mxu0 0
  %517 = vmatpush1.bf16.msra.mxu0 %v402
  %518 = vmatprep.subr.bf16.mxu0 0
  %519 = vmatpush1.bf16.msra.mxu0 %v403
  %520 = vmatprep.subr.bf16.mxu0 0
  %521 = vmatpush1.bf16.msra.mxu0 %v404
  %522 = vmatprep.subr.bf16.mxu0 0
  %523 = vmatpush1.bf16.msra.mxu0 %v405
  %524 = vmatprep.subr.bf16.mxu0 0
  %525 = vmatpush1.bf16.msra.mxu0 %v406
  %526 = vmatprep.subr.bf16.mxu0 0
  %527 = vmatpush1.bf16.msra.mxu0 %v407
  %528 = vmatprep.subr.bf16.mxu0 0
  %529 = vmatpush1.bf16.msra.mxu0 %v408
  %530 = vmatprep.subr.bf16.mxu0 0
  %531 = vmatpush1.bf16.msra.mxu0 %v409
  %532 = vmatprep.subr.bf16.mxu0 0
  %533 = vmatpush1.bf16.msra.mxu0 %v410
  %534 = vmatprep.subr.bf16.mxu0 0
  %535 = vmatpush1.bf16.msra.mxu0 %v411
  %536 = vmatprep.subr.bf16.mxu0 0
  %537 = vmatpush1.bf16.msra.mxu0 %v412
  %538 = vmatprep.mubr.bf16.mxu0 %v78
  %539 = vmatmul.mubr.bf16.gmra.mrb[0].mxu0 %v77
  %v540 = vpop.f32.mrb[0].mxu0
  %v541 = vadd.f32 %v191, %v540
  %v542 = vpop.f32.mrb[0].mxu0
  %v543 = vpop.f32.mrb[0].mxu0
  %v544 = vpop.f32.mrb[0].mxu0
  %545 = vdwg.mxu0
  %546 = vmatprep.subr.bf16.mxu0 0
  %547 = vmatpush1.bf16.msra.mxu0 %v413
  %548 = vmatprep.subr.bf16.mxu0 0
  %549 = vmatpush1.bf16.msra.mxu0 %v414
  %550 = vmatprep.subr.bf16.mxu0 0
  %551 = vmatpush1.bf16.msra.mxu0 %v415
  %552 = vmatprep.subr.bf16.mxu0 0
  %553 = vmatpush1.bf16.msra.mxu0 %v416
  %554 = vmatprep.subr.bf16.mxu0 0
  %555 = vmatpush1.bf16.msra.mxu0 %v417
  %556 = vmatprep.subr.bf16.mxu0 0
  %557 = vmatpush1.bf16.msra.mxu0 %v418
  %558 = vmatprep.subr.bf16.mxu0 0
  %559 = vmatpush1.bf16.msra.mxu0 %v419
  %560 = vmatprep.subr.bf16.mxu0 0
  %561 = vmatpush1.bf16.msra.mxu0 %v420
  %562 = vmatprep.subr.bf16.mxu0 0
  %563 = vmatpush1.bf16.msra.mxu0 %v421
  %564 = vmatprep.subr.bf16.mxu0 0
  %565 = vmatpush1.bf16.msra.mxu0 %v422
  %566 = vmatprep.subr.bf16.mxu0 0
  %567 = vmatpush1.bf16.msra.mxu0 %v423
  %568 = vmatprep.subr.bf16.mxu0 0
  %569 = vmatpush1.bf16.msra.mxu0 %v424
  %570 = vmatprep.subr.bf16.mxu0 0
  %571 = vmatpush1.bf16.msra.mxu0 %v425
  %572 = vmatprep.subr.bf16.mxu0 0
  %573 = vmatpush1.bf16.msra.mxu0 %v426
  %574 = vmatprep.subr.bf16.mxu0 0
  %575 = vmatpush1.bf16.msra.mxu0 %v427
  %576 = vmatprep.subr.bf16.mxu0 0
  %577 = vmatpush1.bf16.msra.mxu0 %v428
  %578 = vmatprep.mubr.bf16.mxu0 %v80
  %579 = vmatmul.mubr.bf16.gmra.mrb[0].mxu0 %v79
  %v580 = vpop.f32.mrb[0].mxu0
  %v581 = vadd.f32 %v541, %v580
  %v582 = vpop.f32.mrb[0].mxu0
  %v583 = vpop.f32.mrb[0].mxu0
  %v584 = vpop.f32.mrb[0].mxu0
  %585 = vdwg.mxu0
  %586 = vmatprep.subr.bf16.mxu0 0
  %587 = vmatpush1.bf16.msra.mxu0 %v429
  %588 = vmatprep.subr.bf16.mxu0 0
  %589 = vmatpush1.bf16.msra.mxu0 %v430
  %590 = vmatprep.subr.bf16.mxu0 0
  %591 = vmatpush1.bf16.msra.mxu0 %v431
  %592 = vmatprep.subr.bf16.mxu0 0
  %593 = vmatpush1.bf16.msra.mxu0 %v432
  %594 = vmatprep.subr.bf16.mxu0 0
  %595 = vmatpush1.bf16.msra.mxu0 %v433
  %596 = vmatprep.subr.bf16.mxu0 0
  %597 = vmatpush1.bf16.msra.mxu0 %v434
  %598 = vmatprep.subr.bf16.mxu0 0
  %599 = vmatpush1.bf16.msra.mxu0 %v435
  %600 = vmatprep.subr.bf16.mxu0 0
  %601 = vmatpush1.bf16.msra.mxu0 %v436
  %602 = vmatprep.subr.bf16.mxu0 0
  %603 = vmatpush1.bf16.msra.mxu0 %v437
  %604 = vmatprep.subr.bf16.mxu0 0
  %605 = vmatpush1.bf16.msra.mxu0 %v438
  %606 = vmatprep.subr.bf16.mxu0 0
  %607 = vmatpush1.bf16.msra.mxu0 %v439
  %608 = vmatprep.subr.bf16.mxu0 0
  %609 = vmatpush1.bf16.msra.mxu0 %v440
  %610 = vmatprep.subr.bf16.mxu0 0
  %611 = vmatpush1.bf16.msra.mxu0 %v441
  %612 = vmatprep.subr.bf16.mxu0 0
  %613 = vmatpush1.bf16.msra.mxu0 %v442
  %614 = vmatprep.subr.bf16.mxu0 0
  %615 = vmatpush1.bf16.msra.mxu0 %v443
  %616 = vmatprep.subr.bf16.mxu0 0
  %617 = vmatpush1.bf16.msra.mxu0 %v444
  %618 = vmatprep.mubr.bf16.mxu0 %v82
  %619 = vmatmul.mubr.bf16.gmra.mrb[0].mxu0 %v81
  %v620 = vpop.f32.mrb[0].mxu0
  %v621 = vadd.f32 %v581, %v620
  %v622 = vpop.f32.mrb[0].mxu0
  %v623 = vpop.f32.mrb[0].mxu0
  %v624 = vpop.f32.mrb[0].mxu0
  %625 = vdwg.mxu0
  %626 = vmatprep.subr.bf16.mxu0 0
  %627 = vmatpush1.bf16.msra.mxu0 %v445
  %628 = vmatprep.subr.bf16.mxu0 0
  %629 = vmatpush1.bf16.msra.mxu0 %v446
  %630 = vmatprep.subr.bf16.mxu0 0
  %631 = vmatpush1.bf16.msra.mxu0 %v504
  %632 = vmatprep.subr.bf16.mxu0 0
  %633 = vmatpush1.bf16.msra.mxu0 0
  %634 = vmatprep.subr.bf16.mxu0 0
  %635 = vmatpush1.bf16.msra.mxu0 0
  %636 = vmatprep.subr.bf16.mxu0 0
  %637 = vmatpush1.bf16.msra.mxu0 0
  %638 = vmatprep.subr.bf16.mxu0 0
  %639 = vmatpush1.bf16.msra.mxu0 0
  %640 = vmatprep.subr.bf16.mxu0 0
  %641 = vmatpush1.bf16.msra.mxu0 0
  %642 = vmatprep.subr.bf16.mxu0 0
  %643 = vmatpush1.bf16.msra.mxu0 0
  %644 = vmatprep.subr.bf16.mxu0 0
  %645 = vmatpush1.bf16.msra.mxu0 0
  %646 = vmatprep.subr.bf16.mxu0 0
  %647 = vmatpush1.bf16.msra.mxu0 0
  %648 = vmatprep.subr.bf16.mxu0 0
  %649 = vmatpush1.bf16.msra.mxu0 0
  %650 = vmatprep.subr.bf16.mxu0 0
  %651 = vmatpush1.bf16.msra.mxu0 0
  %652 = vmatprep.subr.bf16.mxu0 0
  %653 = vmatpush1.bf16.msra.mxu0 0
  %654 = vmatprep.subr.bf16.mxu0 0
  %655 = vmatpush1.bf16.msra.mxu0 0
  %656 = vmatprep.subr.bf16.mxu0 0
  %657 = vmatpush1.bf16.msra.mxu0 0
  %658 = vmatprep.mubr.bf16.mxu0 0
  %659 = vmatmul.mubr.bf16.gmra.mrb[0].mxu0 %v500
  %v660 = vpop.f32.mrb[0].mxu0
  %v661 = vadd.f32 %v621, %v660
  %v662 = vpop.f32.mrb[0].mxu0
  %v663 = vpop.f32.mrb[0].mxu0
  %v664 = vpop.f32.mrb[0].mxu0
  %665 = vdwg.mxu0
  %v666 = vmax.f32 %v661, 0.0
  %v667 = vpack.c.bf16 %v666, %v666
  %v668 = vld [vmem:[%s3] sm:$0xf]
  %v669 = vld [vmem:[%s3 + $0x4] sm:$0xf]
  %v670 = vld [vmem:[%s3 + $0x8] sm:$0xf]
  %v671 = vld [vmem:[%s3 + $0xc] sm:$0xf]
  %v672 = vld [vmem:[%s3 + $0x10] sm:$0xf]
  %v673 = vld [vmem:[%s3 + $0x14] sm:$0xf]
  %v674 = vld [vmem:[%s3 + $0x18] sm:$0xf]
  %v675 = vld [vmem:[%s3 + $0x1c] sm:$0xf]
  %v676 = vld [vmem:[%s3 + $0x20] sm:$0xf]
  %v677 = vld [vmem:[%s3 + $0x24] sm:$0xf]
  %v678 = vld [vmem:[%s3 + $0x28] sm:$0xf]
  %v679 = vld [vmem:[%s3 + $0x2c] sm:$0xf]
  %v680 = vld [vmem:[%s3 + $0x30] sm:$0xf]
  %v681 = vld [vmem:[%s3 + $0x34] sm:$0xf]
  %v682 = vld [vmem:[%s3 + $0x38] sm:$0xf]
  %v683 = vld [vmem:[%s3 + $0x3c] sm:$0xf]
  %v684 = vld [vmem:[%s4] sm:$0x1]
  %v686 = vlaneseq
  %v687 = vshrl.u32 %v686, 7
  %v688 = vsub.s32 0, %v687
  %v689 = vrot.slane %v684, %v688
  %v707 = vunpack.c.l.b16 %v668
  %v708 = vunpack.c.l.b16 %v669
  %v709 = vunpack.c.l.b16 %v670
  %v710 = vunpack.c.l.b16 %v671
  %v711 = vunpack.c.l.b16 %v672
  %v712 = vunpack.c.l.b16 %v673
  %v713 = vunpack.c.l.b16 %v674
  %v714 = vunpack.c.l.b16 %v675
  %v715 = vunpack.c.l.b16 %v676
  %v716 = vunpack.c.l.b16 %v677
  %v717 = vunpack.c.l.b16 %v678
  %v718 = vunpack.c.l.b16 %v679
  %v719 = vunpack.c.l.b16 %v680
  %v720 = vunpack.c.l.b16 %v681
  %v721 = vunpack.c.l.b16 %v682
  %v722 = vunpack.c.l.b16 %v683
  %v723 = vpack.c.b16 %v708, %v707
  %v724 = vpack.c.b16 %v710, %v709
  %v725 = vpack.c.b16 %v712, %v711
  %v726 = vpack.c.b16 %v714, %v713
  %v727 = vpack.c.b16 %v716, %v715
  %v728 = vpack.c.b16 %v718, %v717
  %v729 = vpack.c.b16 %v720, %v719
  %v730 = vpack.c.b16 %v722, %v721
  %739 = vmatprep.subr.bf16.mxu0 0
  %740 = vmatpush1.bf16.msra.mxu0 %v723
  %741 = vmatprep.subr.bf16.mxu0 0
  %742 = vmatpush1.bf16.msra.mxu0 %v724
  %743 = vmatprep.subr.bf16.mxu0 0
  %744 = vmatpush1.bf16.msra.mxu0 %v725
  %745 = vmatprep.subr.bf16.mxu0 0
  %746 = vmatpush1.bf16.msra.mxu0 %v726
  %747 = vmatprep.subr.bf16.mxu0 0
  %748 = vmatpush1.bf16.msra.mxu0 %v727
  %749 = vmatprep.subr.bf16.mxu0 0
  %750 = vmatpush1.bf16.msra.mxu0 %v728
  %751 = vmatprep.subr.bf16.mxu0 0
  %752 = vmatpush1.bf16.msra.mxu0 %v729
  %753 = vmatprep.subr.bf16.mxu0 0
  %754 = vmatpush1.bf16.msra.mxu0 %v730
  %755 = vmatprep.subr.bf16.mxu0 0
  %756 = vmatpush1.bf16.msra.mxu0 0
  %757 = vmatprep.subr.bf16.mxu0 0
  %758 = vmatpush1.bf16.msra.mxu0 0
  %759 = vmatprep.subr.bf16.mxu0 0
  %760 = vmatpush1.bf16.msra.mxu0 0
  %761 = vmatprep.subr.bf16.mxu0 0
  %762 = vmatpush1.bf16.msra.mxu0 0
  %763 = vmatprep.subr.bf16.mxu0 0
  %764 = vmatpush1.bf16.msra.mxu0 0
  %765 = vmatprep.subr.bf16.mxu0 0
  %766 = vmatpush1.bf16.msra.mxu0 0
  %767 = vmatprep.subr.bf16.mxu0 0
  %768 = vmatpush1.bf16.msra.mxu0 0
  %769 = vmatprep.subr.bf16.mxu0 0
  %770 = vmatpush1.bf16.msra.mxu0 0
  %771 = vmatprep.mubr.bf16.mxu0 0
  %772 = vmatmul.mubr.bf16.gmra.mrb[0].mxu0 %v667
  %v773 = vpop.f32.mrb[0].mxu0
  %v774 = vadd.f32 %v689, %v773
  %v775 = vpop.f32.mrb[0].mxu0
  %v776 = vpop.f32.mrb[0].mxu0
  %v777 = vpop.f32.mrb[0].mxu0
  %778 = vdwg.mxu0
  %v779 = vmax.f32 %v774, 0.0
  %v780 = vpack.c.bf16 %v779, %v779
  %v781 = vld [vmem:[%s5] sm:$0xf]
  %v782 = vld [vmem:[%s5 + $0x4] sm:$0xf]
  %v783 = vld [vmem:[%s5 + $0x8] sm:$0xf]
  %v784 = vld [vmem:[%s5 + $0xc] sm:$0xf]
  %v785 = vld [vmem:[%s5 + $0x10] sm:$0xf]
  %v786 = vld [vmem:[%s5 + $0x14] sm:$0xf]
  %v787 = vld [vmem:[%s5 + $0x18] sm:$0xf]
  %v788 = vld [vmem:[%s5 + $0x1c] sm:$0xf]
  %v789 = vld [vmem:[%s5 + $0x20] sm:$0xf]
  %v790 = vld [vmem:[%s5 + $0x24] sm:$0xf]
  %v791 = vld [vmem:[%s5 + $0x28] sm:$0xf]
  %v792 = vld [vmem:[%s5 + $0x2c] sm:$0xf]
  %v793 = vld [vmem:[%s5 + $0x30] sm:$0xf]
  %v794 = vld [vmem:[%s5 + $0x34] sm:$0xf]
  %v795 = vld [vmem:[%s5 + $0x38] sm:$0xf]
  %v796 = vld [vmem:[%s5 + $0x3c] sm:$0xf]
  %v797 = vld [vmem:[%s6] sm:$0x1]
  %v799 = vlaneseq
  %v800 = vshrl.u32 %v799, 7
  %v801 = vsub.s32 0, %v800
  %v802 = vrot.slane %v797, %v801
  %v820 = vunpack.c.l.b16 %v781
  %v821 = vunpack.c.l.b16 %v782
  %v822 = vunpack.c.l.b16 %v783
  %v823 = vunpack.c.l.b16 %v784
  %v824 = vunpack.c.l.b16 %v785
  %v825 = vunpack.c.l.b16 %v786
  %v826 = vunpack.c.l.b16 %v787
  %v827 = vunpack.c.l.b16 %v788
  %v828 = vunpack.c.l.b16 %v789
  %v829 = vunpack.c.l.b16 %v790
  %v830 = vunpack.c.l.b16 %v791
  %v831 = vunpack.c.l.b16 %v792
  %v832 = vunpack.c.l.b16 %v793
  %v833 = vunpack.c.l.b16 %v794
  %v834 = vunpack.c.l.b16 %v795
  %v835 = vunpack.c.l.b16 %v796
  %v836 = vpack.c.b16 %v821, %v820
  %v837 = vpack.c.b16 %v823, %v822
  %v838 = vpack.c.b16 %v825, %v824
  %v839 = vpack.c.b16 %v827, %v826
  %v840 = vpack.c.b16 %v829, %v828
  %v841 = vpack.c.b16 %v831, %v830
  %v842 = vpack.c.b16 %v833, %v832
  %v843 = vpack.c.b16 %v835, %v834
  %852 = vmatprep.subr.bf16.mxu0 0
  %853 = vmatpush1.bf16.msra.mxu0 %v836
  %854 = vmatprep.subr.bf16.mxu0 0
  %855 = vmatpush1.bf16.msra.mxu0 %v837
  %856 = vmatprep.subr.bf16.mxu0 0
  %857 = vmatpush1.bf16.msra.mxu0 %v838
  %858 = vmatprep.subr.bf16.mxu0 0
  %859 = vmatpush1.bf16.msra.mxu0 %v839
  %860 = vmatprep.subr.bf16.mxu0 0
  %861 = vmatpush1.bf16.msra.mxu0 %v840
  %862 = vmatprep.subr.bf16.mxu0 0
  %863 = vmatpush1.bf16.msra.mxu0 %v841
  %864 = vmatprep.subr.bf16.mxu0 0
  %865 = vmatpush1.bf16.msra.mxu0 %v842
  %866 = vmatprep.subr.bf16.mxu0 0
  %867 = vmatpush1.bf16.msra.mxu0 %v843
  %868 = vmatprep.subr.bf16.mxu0 0
  %869 = vmatpush1.bf16.msra.mxu0 0
  %870 = vmatprep.subr.bf16.mxu0 0
  %871 = vmatpush1.bf16.msra.mxu0 0
  %872 = vmatprep.subr.bf16.mxu0 0
  %873 = vmatpush1.bf16.msra.mxu0 0
  %874 = vmatprep.subr.bf16.mxu0 0
  %875 = vmatpush1.bf16.msra.mxu0 0
  %876 = vmatprep.subr.bf16.mxu0 0
  %877 = vmatpush1.bf16.msra.mxu0 0
  %878 = vmatprep.subr.bf16.mxu0 0
  %879 = vmatpush1.bf16.msra.mxu0 0
  %880 = vmatprep.subr.bf16.mxu0 0
  %881 = vmatpush1.bf16.msra.mxu0 0
  %882 = vmatprep.subr.bf16.mxu0 0
  %883 = vmatpush1.bf16.msra.mxu0 0
  %884 = vmatprep.mubr.bf16.mxu0 0
  %885 = vmatmul.mubr.bf16.gmra.mrb[0].mxu0 %v780
  %v886 = vpop.f32.mrb[0].mxu0
  %v887 = vadd.f32 %v802, %v886
  %v888 = vpop.f32.mrb[0].mxu0
  %v889 = vpop.f32.mrb[0].mxu0
  %v890 = vpop.f32.mrb[0].mxu0
  %891 = vdwg.mxu0
  %v892 = vmax.f32 %v887, 0.0
  %v893 = vpack.c.bf16 %v892, %v892
  %v894 = vld [vmem:[%s7] sm:$0xff]
  %v895 = vld [vmem:[%s7 + $0x8] sm:$0xff]
  %v896 = vld [vmem:[%s7 + $0x10] sm:$0xff]
  %v897 = vld [vmem:[%s7 + $0x18] sm:$0xf]
  %v898 = vld [vmem:[%s7 + $0x1c] sm:$0xff]
  %v899 = vld [vmem:[%s7 + $0x24] sm:$0xff]
  %v900 = vld [vmem:[%s7 + $0x2c] sm:$0xff]
  %v901 = vld [vmem:[%s7 + $0x34] sm:$0xf]
  %v902 = vld [vmem:[%s7 + $0x38] sm:$0xff]
  %v903 = vld [vmem:[%s7 + $0x40] sm:$0xff]
  %v904 = vld [vmem:[%s7 + $0x48] sm:$0xff]
  %v905 = vld [vmem:[%s7 + $0x50] sm:$0xf]
  %v906 = vld [vmem:[%s7 + $0x54] sm:$0xff]
  %v907 = vld [vmem:[%s7 + $0x5c] sm:$0xff]
  %v908 = vld [vmem:[%s7 + $0x64] sm:$0xff]
  %v909 = vld [vmem:[%s7 + $0x6c] sm:$0xf]
  %v910 = vld [vmem:[%s7 + $0x70] sm:$0xff]
  %v911 = vld [vmem:[%s7 + $0x78] sm:$0xff]
  %v912 = vld [vmem:[%s7 + $0x80] sm:$0xff]
  %v913 = vld [vmem:[%s7 + $0x88] sm:$0xf]
  %v914 = vld [vmem:[%s7 + $0x8c] sm:$0xff]
  %v915 = vld [vmem:[%s7 + $0x94] sm:$0xff]
  %v916 = vld [vmem:[%s7 + $0x9c] sm:$0xff]
  %v917 = vld [vmem:[%s7 + $0xa4] sm:$0xf]
  %v918 = vld [vmem:[%s7 + $0xa8] sm:$0xff]
  %v919 = vld [vmem:[%s7 + $0xb0] sm:$0xff]
  %v920 = vld [vmem:[%s7 + $0xb8] sm:$0xff]
  %v921 = vld [vmem:[%s7 + $0xc0] sm:$0xf]
  %v922 = vld [vmem:[%s7 + $0xc4] sm:$0xff]
  %v923 = vld [vmem:[%s7 + $0xcc] sm:$0xff]
  %v924 = vld [vmem:[%s7 + $0xd4] sm:$0xff]
  %v925 = vld [vmem:[%s7 + $0xdc] sm:$0xf]
  %v926 = vld [vmem:[%s7 + $0xe0] sm:$0xff]
  %v927 = vld [vmem:[%s7 + $0xe8] sm:$0xff]
  %v928 = vld [vmem:[%s7 + $0xf0] sm:$0xff]
  %v929 = vld [vmem:[%s7 + $0xf8] sm:$0xf]
  %v930 = vld [vmem:[%s7 + $0xfc] sm:$0xff]
  %v931 = vld [vmem:[%s7 + $0x104] sm:$0xff]
  %v932 = vld [vmem:[%s7 + $0x10c] sm:$0xff]
  %v933 = vld [vmem:[%s7 + $0x114] sm:$0xf]
  %v934 = vld [vmem:[%s7 + $0x118] sm:$0xff]
  %v935 = vld [vmem:[%s7 + $0x120] sm:$0xff]
  %v936 = vld [vmem:[%s7 + $0x128] sm:$0xff]
  %v937 = vld [vmem:[%s7 + $0x130] sm:$0xf]
  %v938 = vld [vmem:[%s7 + $0x134] sm:$0xff]
  %v939 = vld [vmem:[%s7 + $0x13c] sm:$0xff]
  %v940 = vld [vmem:[%s7 + $0x144] sm:$0xff]
  %v941 = vld [vmem:[%s7 + $0x14c] sm:$0xf]
  %v942 = vld [vmem:[%s7 + $0x150] sm:$0xff]
  %v943 = vld [vmem:[%s7 + $0x158] sm:$0xff]
  %v944 = vld [vmem:[%s7 + $0x160] sm:$0xff]
  %v945 = vld [vmem:[%s7 + $0x168] sm:$0xf]
  %v946 = vld [vmem:[%s7 + $0x16c] sm:$0xff]
  %v947 = vld [vmem:[%s7 + $0x174] sm:$0xff]
  %v948 = vld [vmem:[%s7 + $0x17c] sm:$0xff]
  %v949 = vld [vmem:[%s7 + $0x184] sm:$0xf]
  %v950 = vld [vmem:[%s7 + $0x188] sm:$0xff]
  %v951 = vld [vmem:[%s7 + $0x190] sm:$0xff]
  %v952 = vld [vmem:[%s7 + $0x198] sm:$0xff]
  %v953 = vld [vmem:[%s7 + $0x1a0] sm:$0xf]
  %v954 = vld [vmem:[%s7 + $0x1a4] sm:$0xff]
  %v955 = vld [vmem:[%s7 + $0x1ac] sm:$0xff]
  %v956 = vld [vmem:[%s7 + $0x1b4] sm:$0xff]
  %v957 = vld [vmem:[%s7 + $0x1bc] sm:$0xf]
  %v958 = vld [vmem:[%s8] sm:$0x7f]
  %v960 = vlaneseq
  %v961 = vshrl.u32 %v960, 7
  %v962 = vsub.s32 0, %v961
  %v963 = vrot.slane %v958, %v962
  %v964 = vlaneseq
  %v965 = vshrl.u32 %v964, 7
  %v966 = vsub.s32 1, %v965
  %v967 = vrot.slane %v958, %v966
  %v968 = vlaneseq
  %v969 = vshrl.u32 %v968, 7
  %v970 = vsub.s32 2, %v969
  %v971 = vrot.slane %v958, %v970
  %v972 = vlaneseq
  %v973 = vshrl.u32 %v972, 7
  %v974 = vsub.s32 3, %v973
  %v975 = vrot.slane %v958, %v974
  %v976 = vlaneseq
  %v977 = vshrl.u32 %v976, 7
  %v978 = vsub.s32 4, %v977
  %v979 = vrot.slane %v958, %v978
  %v980 = vlaneseq
  %v981 = vshrl.u32 %v980, 7
  %v982 = vsub.s32 5, %v981
  %v983 = vrot.slane %v958, %v982
  %v984 = vlaneseq
  %v985 = vshrl.u32 %v984, 7
  %v986 = vsub.s32 6, %v985
  %v987 = vrot.slane %v958, %v986
  %v1059 = vunpack.c.l.b16 %v894
  %v1060 = vunpack.c.h.b16 %v894
  %v1061 = vunpack.c.l.b16 %v895
  %v1062 = vunpack.c.h.b16 %v895
  %v1063 = vunpack.c.l.b16 %v896
  %v1064 = vunpack.c.h.b16 %v896
  %v1065 = vunpack.c.l.b16 %v897
  %v1066 = vunpack.c.l.b16 %v898
  %v1067 = vunpack.c.h.b16 %v898
  %v1068 = vunpack.c.l.b16 %v899
  %v1069 = vunpack.c.h.b16 %v899
  %v1070 = vunpack.c.l.b16 %v900
  %v1071 = vunpack.c.h.b16 %v900
  %v1072 = vunpack.c.l.b16 %v901
  %v1073 = vunpack.c.l.b16 %v902
  %v1074 = vunpack.c.h.b16 %v902
  %v1075 = vunpack.c.l.b16 %v903
  %v1076 = vunpack.c.h.b16 %v903
  %v1077 = vunpack.c.l.b16 %v904
  %v1078 = vunpack.c.h.b16 %v904
  %v1079 = vunpack.c.l.b16 %v905
  %v1080 = vunpack.c.l.b16 %v906
  %v1081 = vunpack.c.h.b16 %v906
  %v1082 = vunpack.c.l.b16 %v907
  %v1083 = vunpack.c.h.b16 %v907
  %v1084 = vunpack.c.l.b16 %v908
  %v1085 = vunpack.c.h.b16 %v908
  %v1086 = vunpack.c.l.b16 %v909
  %v1087 = vunpack.c.l.b16 %v910
  %v1088 = vunpack.c.h.b16 %v910
  %v1089 = vunpack.c.l.b16 %v911
  %v1090 = vunpack.c.h.b16 %v911
  %v1091 = vunpack.c.l.b16 %v912
  %v1092 = vunpack.c.h.b16 %v912
  %v1093 = vunpack.c.l.b16 %v913
  %v1094 = vunpack.c.l.b16 %v914
  %v1095 = vunpack.c.h.b16 %v914
  %v1096 = vunpack.c.l.b16 %v915
  %v1097 = vunpack.c.h.b16 %v915
  %v1098 = vunpack.c.l.b16 %v916
  %v1099 = vunpack.c.h.b16 %v916
  %v1100 = vunpack.c.l.b16 %v917
  %v1101 = vunpack.c.l.b16 %v918
  %v1102 = vunpack.c.h.b16 %v918
  %v1103 = vunpack.c.l.b16 %v919
  %v1104 = vunpack.c.h.b16 %v919
  %v1105 = vunpack.c.l.b16 %v920
  %v1106 = vunpack.c.h.b16 %v920
  %v1107 = vunpack.c.l.b16 %v921
  %v1108 = vunpack.c.l.b16 %v922
  %v1109 = vunpack.c.h.b16 %v922
  %v1110 = vunpack.c.l.b16 %v923
  %v1111 = vunpack.c.h.b16 %v923
  %v1112 = vunpack.c.l.b16 %v924
  %v1113 = vunpack.c.h.b16 %v924
  %v1114 = vunpack.c.l.b16 %v925
  %v1115 = vunpack.c.l.b16 %v926
  %v1116 = vunpack.c.h.b16 %v926
  %v1117 = vunpack.c.l.b16 %v927
  %v1118 = vunpack.c.h.b16 %v927
  %v1119 = vunpack.c.l.b16 %v928
  %v1120 = vunpack.c.h.b16 %v928
  %v1121 = vunpack.c.l.b16 %v929
  %v1122 = vunpack.c.l.b16 %v930
  %v1123 = vunpack.c.h.b16 %v930
  %v1124 = vunpack.c.l.b16 %v931
  %v1125 = vunpack.c.h.b16 %v931
  %v1126 = vunpack.c.l.b16 %v932
  %v1127 = vunpack.c.h.b16 %v932
  %v1128 = vunpack.c.l.b16 %v933
  %v1129 = vunpack.c.l.b16 %v934
  %v1130 = vunpack.c.h.b16 %v934
  %v1131 = vunpack.c.l.b16 %v935
  %v1132 = vunpack.c.h.b16 %v935
  %v1133 = vunpack.c.l.b16 %v936
  %v1134 = vunpack.c.h.b16 %v936
  %v1135 = vunpack.c.l.b16 %v937
  %v1136 = vunpack.c.l.b16 %v938
  %v1137 = vunpack.c.h.b16 %v938
  %v1138 = vunpack.c.l.b16 %v939
  %v1139 = vunpack.c.h.b16 %v939
  %v1140 = vunpack.c.l.b16 %v940
  %v1141 = vunpack.c.h.b16 %v940
  %v1142 = vunpack.c.l.b16 %v941
  %v1143 = vunpack.c.l.b16 %v942
  %v1144 = vunpack.c.h.b16 %v942
  %v1145 = vunpack.c.l.b16 %v943
  %v1146 = vunpack.c.h.b16 %v943
  %v1147 = vunpack.c.l.b16 %v944
  %v1148 = vunpack.c.h.b16 %v944
  %v1149 = vunpack.c.l.b16 %v945
  %v1150 = vunpack.c.l.b16 %v946
  %v1151 = vunpack.c.h.b16 %v946
  %v1152 = vunpack.c.l.b16 %v947
  %v1153 = vunpack.c.h.b16 %v947
  %v1154 = vunpack.c.l.b16 %v948
  %v1155 = vunpack.c.h.b16 %v948
  %v1156 = vunpack.c.l.b16 %v949
  %v1157 = vunpack.c.l.b16 %v950
  %v1158 = vunpack.c.h.b16 %v950
  %v1159 = vunpack.c.l.b16 %v951
  %v1160 = vunpack.c.h.b16 %v951
  %v1161 = vunpack.c.l.b16 %v952
  %v1162 = vunpack.c.h.b16 %v952
  %v1163 = vunpack.c.l.b16 %v953
  %v1164 = vunpack.c.l.b16 %v954
  %v1165 = vunpack.c.h.b16 %v954
  %v1166 = vunpack.c.l.b16 %v955
  %v1167 = vunpack.c.h.b16 %v955
  %v1168 = vunpack.c.l.b16 %v956
  %v1169 = vunpack.c.h.b16 %v956
  %v1170 = vunpack.c.l.b16 %v957
  %v1171 = vpack.c.b16 %v1066, %v1059
  %v1172 = vpack.c.b16 %v1067, %v1060
  %v1173 = vpack.c.b16 %v1068, %v1061
  %v1174 = vpack.c.b16 %v1069, %v1062
  %v1175 = vpack.c.b16 %v1070, %v1063
  %v1176 = vpack.c.b16 %v1071, %v1064
  %v1177 = vpack.c.b16 %v1072, %v1065
  %v1178 = vpack.c.b16 %v1080, %v1073
  %v1179 = vpack.c.b16 %v1081, %v1074
  %v1180 = vpack.c.b16 %v1082, %v1075
  %v1181 = vpack.c.b16 %v1083, %v1076
  %v1182 = vpack.c.b16 %v1084, %v1077
  %v1183 = vpack.c.b16 %v1085, %v1078
  %v1184 = vpack.c.b16 %v1086, %v1079
  %v1185 = vpack.c.b16 %v1094, %v1087
  %v1186 = vpack.c.b16 %v1095, %v1088
  %v1187 = vpack.c.b16 %v1096, %v1089
  %v1188 = vpack.c.b16 %v1097, %v1090
  %v1189 = vpack.c.b16 %v1098, %v1091
  %v1190 = vpack.c.b16 %v1099, %v1092
  %v1191 = vpack.c.b16 %v1100, %v1093
  %v1192 = vpack.c.b16 %v1108, %v1101
  %v1193 = vpack.c.b16 %v1109, %v1102
  %v1194 = vpack.c.b16 %v1110, %v1103
  %v1195 = vpack.c.b16 %v1111, %v1104
  %v1196 = vpack.c.b16 %v1112, %v1105
  %v1197 = vpack.c.b16 %v1113, %v1106
  %v1198 = vpack.c.b16 %v1114, %v1107
  %v1199 = vpack.c.b16 %v1122, %v1115
  %v1200 = vpack.c.b16 %v1123, %v1116
  %v1201 = vpack.c.b16 %v1124, %v1117
  %v1202 = vpack.c.b16 %v1125, %v1118
  %v1203 = vpack.c.b16 %v1126, %v1119
  %v1204 = vpack.c.b16 %v1127, %v1120
  %v1205 = vpack.c.b16 %v1128, %v1121
  %v1206 = vpack.c.b16 %v1136, %v1129
  %v1207 = vpack.c.b16 %v1137, %v1130
  %v1208 = vpack.c.b16 %v1138, %v1131
  %v1209 = vpack.c.b16 %v1139, %v1132
  %v1210 = vpack.c.b16 %v1140, %v1133
  %v1211 = vpack.c.b16 %v1141, %v1134
  %v1212 = vpack.c.b16 %v1142, %v1135
  %v1213 = vpack.c.b16 %v1150, %v1143
  %v1214 = vpack.c.b16 %v1151, %v1144
  %v1215 = vpack.c.b16 %v1152, %v1145
  %v1216 = vpack.c.b16 %v1153, %v1146
  %v1217 = vpack.c.b16 %v1154, %v1147
  %v1218 = vpack.c.b16 %v1155, %v1148
  %v1219 = vpack.c.b16 %v1156, %v1149
  %v1220 = vpack.c.b16 %v1164, %v1157
  %v1221 = vpack.c.b16 %v1165, %v1158
  %v1222 = vpack.c.b16 %v1166, %v1159
  %v1223 = vpack.c.b16 %v1167, %v1160
  %v1224 = vpack.c.b16 %v1168, %v1161
  %v1225 = vpack.c.b16 %v1169, %v1162
  %v1226 = vpack.c.b16 %v1170, %v1163
  %1283 = vmatprep.subr.bf16.mxu0 %v1172
  %1284 = vmatpush1.bf16.msra.mxu0 %v1171
  %1285 = vmatprep.subr.bf16.mxu0 %v1179
  %1286 = vmatpush1.bf16.msra.mxu0 %v1178
  %1287 = vmatprep.subr.bf16.mxu0 %v1186
  %1288 = vmatpush1.bf16.msra.mxu0 %v1185
  %1289 = vmatprep.subr.bf16.mxu0 %v1193
  %1290 = vmatpush1.bf16.msra.mxu0 %v1192
  %1291 = vmatprep.subr.bf16.mxu0 %v1200
  %1292 = vmatpush1.bf16.msra.mxu0 %v1199
  %1293 = vmatprep.subr.bf16.mxu0 %v1207
  %1294 = vmatpush1.bf16.msra.mxu0 %v1206
  %1295 = vmatprep.subr.bf16.mxu0 %v1214
  %1296 = vmatpush1.bf16.msra.mxu0 %v1213
  %1297 = vmatprep.subr.bf16.mxu0 %v1221
  %1298 = vmatpush1.bf16.msra.mxu0 %v1220
  %1299 = vmatprep.subr.bf16.mxu0 0
  %1300 = vmatpush1.bf16.msra.mxu0 0
  %1301 = vmatprep.subr.bf16.mxu0 0
  %1302 = vmatpush1.bf16.msra.mxu0 0
  %1303 = vmatprep.subr.bf16.mxu0 0
  %1304 = vmatpush1.bf16.msra.mxu0 0
  %1305 = vmatprep.subr.bf16.mxu0 0
  %1306 = vmatpush1.bf16.msra.mxu0 0
  %1307 = vmatprep.subr.bf16.mxu0 0
  %1308 = vmatpush1.bf16.msra.mxu0 0
  %1309 = vmatprep.subr.bf16.mxu0 0
  %1310 = vmatpush1.bf16.msra.mxu0 0
  %1311 = vmatprep.subr.bf16.mxu0 0
  %1312 = vmatpush1.bf16.msra.mxu0 0
  %1313 = vmatprep.subr.bf16.mxu0 0
  %1314 = vmatpush1.bf16.msra.mxu0 0
  %1315 = vmatprep.mubr.bf16.mxu0 0
  %1316 = vmatmul.mubr.bf16.gmra.mrb[0].mxu0 %v893
  %v1317 = vpop.f32.mrb[0].mxu0
  %v1318 = vadd.f32 %v963, %v1317
  %v1319 = vpop.f32.mrb[0].mxu0
  %v1320 = vadd.f32 %v967, %v1319
  %v1321 = vpop.f32.mrb[0].mxu0
  %v1322 = vpop.f32.mrb[0].mxu0
  %1323 = vdwg.mxu0
  %1324 = vmatprep.subr.bf16.mxu0 %v1174
  %1325 = vmatpush1.bf16.msra.mxu0 %v1173
  %1326 = vmatprep.subr.bf16.mxu0 %v1181
  %1327 = vmatpush1.bf16.msra.mxu0 %v1180
  %1328 = vmatprep.subr.bf16.mxu0 %v1188
  %1329 = vmatpush1.bf16.msra.mxu0 %v1187
  %1330 = vmatprep.subr.bf16.mxu0 %v1195
  %1331 = vmatpush1.bf16.msra.mxu0 %v1194
  %1332 = vmatprep.subr.bf16.mxu0 %v1202
  %1333 = vmatpush1.bf16.msra.mxu0 %v1201
  %1334 = vmatprep.subr.bf16.mxu0 %v1209
  %1335 = vmatpush1.bf16.msra.mxu0 %v1208
  %1336 = vmatprep.subr.bf16.mxu0 %v1216
  %1337 = vmatpush1.bf16.msra.mxu0 %v1215
  %1338 = vmatprep.subr.bf16.mxu0 %v1223
  %1339 = vmatpush1.bf16.msra.mxu0 %v1222
  %1340 = vmatprep.subr.bf16.mxu0 0
  %1341 = vmatpush1.bf16.msra.mxu0 0
  %1342 = vmatprep.subr.bf16.mxu0 0
  %1343 = vmatpush1.bf16.msra.mxu0 0
  %1344 = vmatprep.subr.bf16.mxu0 0
  %1345 = vmatpush1.bf16.msra.mxu0 0
  %1346 = vmatprep.subr.bf16.mxu0 0
  %1347 = vmatpush1.bf16.msra.mxu0 0
  %1348 = vmatprep.subr.bf16.mxu0 0
  %1349 = vmatpush1.bf16.msra.mxu0 0
  %1350 = vmatprep.subr.bf16.mxu0 0
  %1351 = vmatpush1.bf16.msra.mxu0 0
  %1352 = vmatprep.subr.bf16.mxu0 0
  %1353 = vmatpush1.bf16.msra.mxu0 0
  %1354 = vmatprep.subr.bf16.mxu0 0
  %1355 = vmatpush1.bf16.msra.mxu0 0
  %1356 = vmatprep.mubr.bf16.mxu0 0
  %1357 = vmatmul.mubr.bf16.gmra.mrb[0].mxu0 %v893
  %v1358 = vpop.f32.mrb[0].mxu0
  %v1359 = vadd.f32 %v971, %v1358
  %v1360 = vpop.f32.mrb[0].mxu0
  %v1361 = vadd.f32 %v975, %v1360
  %v1362 = vpop.f32.mrb[0].mxu0
  %v1363 = vpop.f32.mrb[0].mxu0
  %1364 = vdwg.mxu0
  %1365 = vmatprep.subr.bf16.mxu0 %v1176
  %1366 = vmatpush1.bf16.msra.mxu0 %v1175
  %1367 = vmatprep.subr.bf16.mxu0 %v1183
  %1368 = vmatpush1.bf16.msra.mxu0 %v1182
  %1369 = vmatprep.subr.bf16.mxu0 %v1190
  %1370 = vmatpush1.bf16.msra.mxu0 %v1189
  %1371 = vmatprep.subr.bf16.mxu0 %v1197
  %1372 = vmatpush1.bf16.msra.mxu0 %v1196
  %1373 = vmatprep.subr.bf16.mxu0 %v1204
  %1374 = vmatpush1.bf16.msra.mxu0 %v1203
  %1375 = vmatprep.subr.bf16.mxu0 %v1211
  %1376 = vmatpush1.bf16.msra.mxu0 %v1210
  %1377 = vmatprep.subr.bf16.mxu0 %v1218
  %1378 = vmatpush1.bf16.msra.mxu0 %v1217
  %1379 = vmatprep.subr.bf16.mxu0 %v1225
  %1380 = vmatpush1.bf16.msra.mxu0 %v1224
  %1381 = vmatprep.subr.bf16.mxu0 0
  %1382 = vmatpush1.bf16.msra.mxu0 0
  %1383 = vmatprep.subr.bf16.mxu0 0
  %1384 = vmatpush1.bf16.msra.mxu0 0
  %1385 = vmatprep.subr.bf16.mxu0 0
  %1386 = vmatpush1.bf16.msra.mxu0 0
  %1387 = vmatprep.subr.bf16.mxu0 0
  %1388 = vmatpush1.bf16.msra.mxu0 0
  %1389 = vmatprep.subr.bf16.mxu0 0
  %1390 = vmatpush1.bf16.msra.mxu0 0
  %1391 = vmatprep.subr.bf16.mxu0 0
  %1392 = vmatpush1.bf16.msra.mxu0 0
  %1393 = vmatprep.subr.bf16.mxu0 0
  %1394 = vmatpush1.bf16.msra.mxu0 0
  %1395 = vmatprep.subr.bf16.mxu0 0
  %1396 = vmatpush1.bf16.msra.mxu0 0
  %1397 = vmatprep.mubr.bf16.mxu0 0
  %1398 = vmatmul.mubr.bf16.gmra.mrb[0].mxu0 %v893
  %v1399 = vpop.f32.mrb[0].mxu0
  %v1400 = vadd.f32 %v979, %v1399
  %v1401 = vpop.f32.mrb[0].mxu0
  %v1402 = vadd.f32 %v983, %v1401
  %v1403 = vpop.f32.mrb[0].mxu0
  %v1404 = vpop.f32.mrb[0].mxu0
  %1405 = vdwg.mxu0
  %1406 = vmatprep.subr.bf16.mxu0 0
  %1407 = vmatpush1.bf16.msra.mxu0 %v1177
  %1408 = vmatprep.subr.bf16.mxu0 0
  %1409 = vmatpush1.bf16.msra.mxu0 %v1184
  %1410 = vmatprep.subr.bf16.mxu0 0
  %1411 = vmatpush1.bf16.msra.mxu0 %v1191
  %1412 = vmatprep.subr.bf16.mxu0 0
  %1413 = vmatpush1.bf16.msra.mxu0 %v1198
  %1414 = vmatprep.subr.bf16.mxu0 0
  %1415 = vmatpush1.bf16.msra.mxu0 %v1205
  %1416 = vmatprep.subr.bf16.mxu0 0
  %1417 = vmatpush1.bf16.msra.mxu0 %v1212
  %1418 = vmatprep.subr.bf16.mxu0 0
  %1419 = vmatpush1.bf16.msra.mxu0 %v1219
  %1420 = vmatprep.subr.bf16.mxu0 0
  %1421 = vmatpush1.bf16.msra.mxu0 %v1226
  %1422 = vmatprep.subr.bf16.mxu0 0
  %1423 = vmatpush1.bf16.msra.mxu0 0
  %1424 = vmatprep.subr.bf16.mxu0 0
  %1425 = vmatpush1.bf16.msra.mxu0 0
  %1426 = vmatprep.subr.bf16.mxu0 0
  %1427 = vmatpush1.bf16.msra.mxu0 0
  %1428 = vmatprep.subr.bf16.mxu0 0
  %1429 = vmatpush1.bf16.msra.mxu0 0
  %1430 = vmatprep.subr.bf16.mxu0 0
  %1431 = vmatpush1.bf16.msra.mxu0 0
  %1432 = vmatprep.subr.bf16.mxu0 0
  %1433 = vmatpush1.bf16.msra.mxu0 0
  %1434 = vmatprep.subr.bf16.mxu0 0
  %1435 = vmatpush1.bf16.msra.mxu0 0
  %1436 = vmatprep.subr.bf16.mxu0 0
  %1437 = vmatpush1.bf16.msra.mxu0 0
  %1438 = vmatprep.mubr.bf16.mxu0 0
  %1439 = vmatmul.mubr.bf16.gmra.mrb[0].mxu0 %v893
  %v1440 = vpop.f32.mrb[0].mxu0
  %v1441 = vadd.f32 %v987, %v1440
  %v1442 = vpop.f32.mrb[0].mxu0
  %v1443 = vpop.f32.mrb[0].mxu0
  %v1444 = vpop.f32.mrb[0].mxu0
  %1445 = vdwg.mxu0
  %v1453 = vcombine.low %v1318, %v1320
  %v1454 = vcombine.low %v1359, %v1361
  %v1456 = vunpack.c.l.s4 1983009808
  %v1457 = vunpack.c.0.s8 %v1456
  %v1458 = vlaneseq
  %v1459 = vshrl.u32 %v1458, 7
  %v1460 = vsub.s32 %v1457, %v1459
  %v1461 = vrot.slane %v1453, %v1460
  %v1463 = vunpack.c.l.s4 1983009808
  %v1464 = vunpack.c.0.s8 %v1463
  %v1465 = vlaneseq
  %v1466 = vshrl.u32 %v1465, 7
  %v1467 = vsub.s32 %v1464, %v1466
  %v1468 = vrot.slane %v1454, %v1467
  %v1469 = vcombine.low %v1461, %v1468
  %v1470 = vcombine.low %v1400, %v1402
  %v1472 = vunpack.c.l.s4 1983009808
  %v1473 = vunpack.c.0.s8 %v1472
  %v1474 = vlaneseq
  %v1475 = vshrl.u32 %v1474, 7
  %v1476 = vsub.s32 %v1473, %v1475
  %v1477 = vrot.slane %v1470, %v1476
  %v1479 = vunpack.c.l.s4 1983009808
  %v1480 = vunpack.c.0.s8 %v1479
  %v1481 = vlaneseq
  %v1482 = vshrl.u32 %v1481, 7
  %v1483 = vsub.s32 %v1480, %v1482
  %v1484 = vrot.slane %v1441, %v1483
  %v1485 = vcombine.low %v1477, %v1484
  %1488 = vst [vmem:[%s9] sm:$0xff] %v1469
  %vm1489 = vcmask 1041408
  %vm1490 = vcmask 1043458
  %vm1491 = vmor %vm1490, %vm1489
  %vm1492 = vcmask 357380
  %vm1493 = vmor %vm1492, %vm1491
  %1494 = vst.msk [vmem:[%s9 + $0x8] sm:$0x3f] %vm1493, %v1485
  // Predicated region
  $region38: #{mlpae_forward.1} parent=0 // pred_check
    _
  $region39: #{mlpae_forward.1} parent=0 // pred_check_branch
    %1496 = sbr.rel (0) target = $region41
  $region40: #{mlpae_forward.1} parent=0 // pred_region
    _
  $region41: #{mlpae_forward.1} parent=0 // pred_fallthru
    _
  // Predicated region
  $region42: #{mlpae_forward.1} parent=0 // pred_check
    _
  $region43: #{mlpae_forward.1} parent=0 // pred_check_branch
    %1498 = sbr.rel (0) target = $region45
  $region44: #{mlpae_forward.1} parent=0 // pred_region
    _
  $region45: #{mlpae_forward.1} parent=0 // pred_fallthru
    _

</llo_original>
